<compile_context>
chip_gen: v7x
topology: tpu7x:2x2x1
jax: 0.10.0
libtpu: 0.0.40
codegen_flags: <defaults>
</compile_context>

<pallas_src>
import jax
import jax.numpy as jnp
from jax.experimental import pallas as pl
from jax.experimental.pallas import tpu as pltpu

HIDDEN = 50          # logical hidden width (PyTorch module)
LANE = 128           # TPU lane width
MAX_TILE = 8192      # batch rows (lanes) per grid step for large batches


def _detect_bf16_eup():
    """bf16 VPU/EUP exists on v6e/v7x; v5e (and older) should stay f32."""
    try:
        kind = jax.devices()[0].device_kind.lower()
    except Exception:
        return False
    return ("v6" in kind) or ("v7" in kind) or ("7x" in kind)


USE_BF16_EUP = _detect_bf16_eup()
# bf16 packs 16 sublanes/vreg -> keep 64; f32 path trims dead rows to 56 (8-aligned).
HPAD = 64 if USE_BF16_EUP else 56


def _ode_mlp_kernel(y_ref, w1_ref, b1_ref, w2_ref, b2_ref, w3_ref, b3_ref, o_ref):
    # y_ref: (1, TILE) lane-dense batch row; weights live hidden-on-sublanes.
    y = y_ref[...].astype(jnp.float32)                                # (1, TILE)

    # Layer 1: Linear(1, H) + Tanh  -> broadcast multiply, no matmul needed.
    z1 = w1_ref[...] * y + b1_ref[...]                                # (HPAD, TILE) f32
    if USE_BF16_EUP:
        h1 = jnp.tanh(z1.astype(jnp.bfloat16))                        # bf16 EUP (v6e/v7x)
    else:
        h1 = jnp.tanh(z1).astype(jnp.bfloat16)                        # f32 EUP (v5e), bf16 for MXU

    # Layer 2: Linear(H, H) + ELU  -> bf16 MXU matmul, f32 accumulation;
    # batch fills the lane dim.
    z2 = jnp.dot(w2_ref[...], h1,
                 preferred_element_type=jnp.float32) + b2_ref[...]    # (HPAD, TILE) f32
    zneg = jnp.minimum(z2, 0.0)
    if USE_BF16_EUP:
        expz = jnp.exp(zneg.astype(jnp.bfloat16)).astype(jnp.float32)  # bf16 EUP
    else:
        expz = jnp.exp(zneg)                                           # f32 EUP (v5e)
    # TODO(synk): PyTorch ELU uses expm1; exp-1 loses a little relative precision
    # for tiny negative z2, but the absolute error is far below the bf16 matmul
    # quantization, so exp-1 is kept for guaranteed lowering.
    h2 = jnp.where(z2 > 0.0, z2, expz - 1.0)                           # ELU(alpha=1)

    # Layer 3: Linear(H, 1) -> elementwise mul + sublane (XLU) reduction;
    # output stays lane-dense.
    out = jnp.sum(w3_ref[...] * h2, axis=0, keepdims=True) + b3_ref[...]  # (1, TILE)
    o_ref[...] = out.astype(o_ref.dtype)


def init_params(key):
    """Deterministic init matching the PyTorch module's __init__.

    Weights are kept in PyTorch [out, in] orientation so a real torch
    state_dict could be substituted directly.
    """
    k1, k2, k3 = jax.random.split(key, 3)
    std = 0.1
    return {
        "w1": jax.random.normal(k1, (HIDDEN, 1), jnp.float32) * std,       # [50, 1]
        "b1": jnp.zeros((HIDDEN,), jnp.float32),
        "w2": jax.random.normal(k2, (HIDDEN, HIDDEN), jnp.float32) * std,  # [50, 50]
        "b2": jnp.zeros((HIDDEN,), jnp.float32),
        "w3": jax.random.normal(k3, (1, HIDDEN), jnp.float32) * std,       # [1, 50]
        "b3": jnp.zeros((1,), jnp.float32),
    }


def pack_params(params):
    """Re-pack PyTorch-oriented params into the kernel's padded column layout.

    Call ONCE outside the ODE-solver hot loop and pass the result to ode_func.
    """
    ph = HPAD - HIDDEN
    w1c = jnp.pad(params["w1"].astype(jnp.float32), ((0, ph), (0, 0)))          # (HPAD, 1)
    b1c = jnp.pad(params["b1"].astype(jnp.float32).reshape(HIDDEN, 1),
                  ((0, ph), (0, 0)))                                             # (HPAD, 1)
    # In the transposed layout z2 = W2 @ h1, so W2 stays in [out, in] orientation.
    # Pre-cast to bf16 once so the MXU feed isn't re-cast every grid step.
    w2k = jnp.pad(params["w2"].astype(jnp.float32),
                  ((0, ph), (0, ph))).astype(jnp.bfloat16)                       # (HPAD, HPAD)
    b2c = jnp.pad(params["b2"].astype(jnp.float32).reshape(HIDDEN, 1),
                  ((0, ph), (0, 0)))                                             # (HPAD, 1)
    w3c = jnp.pad(params["w3"].astype(jnp.float32).T, ((0, ph), (0, 0)))         # (HPAD, 1)
    b3 = params["b3"].astype(jnp.float32).reshape(1, 1)                          # (1, 1)
    return (w1c, b1c, w2k, b2c, w3c, b3)


def _tile_and_pad(n):
    """Pick the lane tile and padded batch length (static, shape-derived)."""
    if n <= LANE:
        tile = LANE                                        # single tiny step
    elif n <= 2 * MAX_TILE:
        # Split into >= 2 grid steps so both v7x TensorCores engage on the
        # "parallel" axis; harmless (one extra ~0.35us step) on v5e/v6e.
        half = -(-n // 2)
        tile = ((half + LANE - 1) // LANE) * LANE
        tile = min(tile, MAX_TILE)
    else:
        tile = MAX_TILE
    padded = ((n + tile - 1) // tile) * tile
    return tile, padded


@jax.jit
def ode_func(t, y, packed):
    """Pallas equivalent of ODEFunc.forward(t, y); t is unused.

    `packed` is the output of pack_params(params) (pack once, reuse per call).
    """
    del t
    n = y.shape[0]
    assert y.shape == (n, 1)
    w1c, b1c, w2k, b2c, w3c, b3 = packed

    tile, padded = _tile_and_pad(n)
    grid = (padded // tile,)

    # Lane-dense input row, zero-padded to the tile multiple.
    y_row = y.reshape(1, n)
    if padded != n:
        y_row = jnp.pad(y_row, ((0, 0), (0, padded - n)))

    full = lambda i: (0, 0)  # weights: same full block every grid step

    cost = pl.CostEstimate(
        flops=2 * HPAD * HPAD * padded + 6 * HPAD * padded,
        transcendentals=2 * HPAD * padded,
        bytes_accessed=8 * padded + HPAD * HPAD * 2 + 4 * HPAD * 4 + 4,
    )

    out_row = pl.pallas_call(
        _ode_mlp_kernel,
        out_shape=jax.ShapeDtypeStruct((1, padded), y.dtype),
        grid_spec=pltpu.PrefetchScalarGridSpec(
            num_scalar_prefetch=0,
            grid=grid,
            in_specs=[
                pl.BlockSpec((1, tile), lambda i: (0, i)),   # y (lane-dense)
                pl.BlockSpec((HPAD, 1), full),               # w1 column (f32)
                pl.BlockSpec((HPAD, 1), full),               # b1 column (f32)
                pl.BlockSpec((HPAD, HPAD), full),            # w2 ([out, in], bf16)
                pl.BlockSpec((HPAD, 1), full),               # b2 column (f32)
                pl.BlockSpec((HPAD, 1), full),               # w3 column (f32)
                pl.BlockSpec((1, 1), full),                  # b3
            ],
            out_specs=pl.BlockSpec((1, tile), lambda i: (0, i)),  # lane-dense out
        ),
        compiler_params=pltpu.CompilerParams(
            dimension_semantics=("parallel",),
            vmem_limit_bytes=48 * 1024 * 1024,
        ),
        cost_estimate=cost,
    )(y_row, w1c, b1c, w2k, b2c, w3c, b3)

    return out_row[:, :n].reshape(n, 1)


def _reference(y, params):
    """Pure-JAX f32 reference (PyTorch semantics) for a correctness spot check."""
    h1 = jnp.tanh(y @ params["w1"].T + params["b1"])
    z2 = h1 @ params["w2"].T + params["b2"]
    h2 = jnp.where(z2 > 0.0, z2, jnp.exp(jnp.minimum(z2, 0.0)) - 1.0)
    return h2 @ params["w3"].T + params["b3"]


if __name__ == "__main__":
    key = jax.random.PRNGKey(0)
    pkey, ykey, ykey2 = jax.random.split(key, 3)

    params = init_params(pkey)
    packed = pack_params(params)      # pack ONCE (outside the solver hot loop)
    t = jnp.float32(0.0)              # unused, kept for API parity

    # bf16 MXU (and bf16 EUP on v6e/v7x) -> compare against f32 ref with a
    # correspondingly loosened tolerance.
    ATOL = 1e-2
    RTOL = 1e-2

    # Small demo batch (the module's natural usage: batch of scalar states).
    y_small = jax.random.normal(ykey, (8, 1), jnp.float32)
    out_small = jax.block_until_ready(ode_func(t, y_small, packed))
    ref_small = _reference(y_small, params)
    assert out_small.shape == (8, 1)
    assert jnp.allclose(out_small, ref_small, atol=ATOL, rtol=RTOL)

    # Larger, non-multiple batch: exercises padding + multi-step ("parallel") grid.
    y_big = jax.random.normal(ykey2, (3000, 1), jnp.float32)
    out_big = jax.block_until_ready(ode_func(t, y_big, packed))
    ref_big = _reference(y_big, params)
    assert out_big.shape == (3000, 1)
    assert jnp.allclose(out_big, ref_big, atol=ATOL, rtol=RTOL)

    print("KERNEL_OK")
</pallas_src>

<mosaic_0001>
module attributes {stable_mosaic.version = 11 : i64} {
  func.func @_ode_mlp_kernel(%arg0: i32, %arg1: memref<1x128xf32, #tpu.memory_space<vmem>>, %arg2: memref<56x1xf32, #tpu.memory_space<vmem>>, %arg3: memref<56x1xf32, #tpu.memory_space<vmem>>, %arg4: memref<56x56xbf16, #tpu.memory_space<vmem>>, %arg5: memref<56x1xf32, #tpu.memory_space<vmem>>, %arg6: memref<56x1xf32, #tpu.memory_space<vmem>>, %arg7: memref<1x1xf32, #tpu.memory_space<vmem>>, %arg8: memref<1x128xf32, #tpu.memory_space<vmem>>) attributes {dimension_semantics = [#tpu.dimension_semantics<parallel>], iteration_bounds = array<i64: 1>, scalar_prefetch = 0 : i64, scratch_operands = 0 : i64, tpu.core_type = #tpu.core_type<tc>, window_params = [{transform_indices = @transform_0, window_bounds = array<i64: 1, 128>}, {pipeline_mode = #tpu.pipeline_mode<synchronous>, transform_indices = @transform_1, window_bounds = array<i64: 56, 1>}, {pipeline_mode = #tpu.pipeline_mode<synchronous>, transform_indices = @transform_2, window_bounds = array<i64: 56, 1>}, {pipeline_mode = #tpu.pipeline_mode<synchronous>, transform_indices = @transform_3, window_bounds = array<i64: 56, 56>}, {pipeline_mode = #tpu.pipeline_mode<synchronous>, transform_indices = @transform_4, window_bounds = array<i64: 56, 1>}, {pipeline_mode = #tpu.pipeline_mode<synchronous>, transform_indices = @transform_5, window_bounds = array<i64: 56, 1>}, {pipeline_mode = #tpu.pipeline_mode<synchronous>, transform_indices = @transform_6, window_bounds = array<i64: 1, 1>}, {transform_indices = @transform_7, window_bounds = array<i64: 1, 128>}]} {
    %c0 = arith.constant 0 : index
    %c0_0 = arith.constant 0 : index
    %0 = vector.load %arg1[%c0, %c0_0] : memref<1x128xf32, #tpu.memory_space<vmem>>, vector<1x128xf32>
    %c0_1 = arith.constant 0 : index
    %c0_2 = arith.constant 0 : index
    %1 = vector.load %arg2[%c0_1, %c0_2] : memref<56x1xf32, #tpu.memory_space<vmem>>, vector<56x1xf32>
    %2 = vector.broadcast %1 : vector<56x1xf32> to vector<56x128xf32>
    %3 = vector.broadcast %0 : vector<1x128xf32> to vector<56x128xf32>
    %4 = arith.mulf %2, %3 : vector<56x128xf32>
    %c0_3 = arith.constant 0 : index
    %c0_4 = arith.constant 0 : index
    %5 = vector.load %arg3[%c0_3, %c0_4] : memref<56x1xf32, #tpu.memory_space<vmem>>, vector<56x1xf32>
    %6 = vector.broadcast %5 : vector<56x1xf32> to vector<56x128xf32>
    %7 = arith.addf %4, %6 : vector<56x128xf32>
    %8 = math.tanh %7 : vector<56x128xf32>
    %9 = arith.truncf %8 : vector<56x128xf32> to vector<56x128xbf16>
    %c0_5 = arith.constant 0 : index
    %c0_6 = arith.constant 0 : index
    %10 = vector.load %arg4[%c0_5, %c0_6] : memref<56x56xbf16, #tpu.memory_space<vmem>>, vector<56x56xbf16>
    %cst = arith.constant dense<0.000000e+00> : vector<56x128xf32>
    %11 = tpu.matmul %10, %9, %cst {dimension_numbers = #tpu.dot_dimension_numbers<[1], [0], [0], [1], [0, 0, 1, 1], [], []>} : vector<56x56xbf16>, vector<56x128xbf16>, vector<56x128xf32> -> vector<56x128xf32>
    %c0_7 = arith.constant 0 : index
    %c0_8 = arith.constant 0 : index
    %12 = vector.load %arg5[%c0_7, %c0_8] : memref<56x1xf32, #tpu.memory_space<vmem>>, vector<56x1xf32>
    %13 = vector.broadcast %12 : vector<56x1xf32> to vector<56x128xf32>
    %14 = arith.addf %11, %13 : vector<56x128xf32>
    %cst_9 = arith.constant 0.000000e+00 : f32
    %15 = vector.broadcast %cst_9 : f32 to vector<56x128xf32>
    %16 = arith.minimumf %14, %15 : vector<56x128xf32>
    %17 = math.exp %16 : vector<56x128xf32>
    %cst_10 = arith.constant 0.000000e+00 : f32
    %18 = vector.broadcast %cst_10 : f32 to vector<56x128xf32>
    %19 = arith.cmpf ogt, %14, %18 : vector<56x128xf32>
    %cst_11 = arith.constant 1.000000e+00 : f32
    %20 = vector.broadcast %cst_11 : f32 to vector<56x128xf32>
    %21 = arith.subf %17, %20 : vector<56x128xf32>
    %22 = arith.select %19, %14, %21 : vector<56x128xi1>, vector<56x128xf32>
    %c0_12 = arith.constant 0 : index
    %c0_13 = arith.constant 0 : index
    %23 = vector.load %arg6[%c0_12, %c0_13] : memref<56x1xf32, #tpu.memory_space<vmem>>, vector<56x1xf32>
    %24 = vector.broadcast %23 : vector<56x1xf32> to vector<56x128xf32>
    %25 = arith.mulf %24, %22 : vector<56x128xf32>
    %cst_14 = arith.constant dense<0.000000e+00> : vector<128xf32>
    %26 = vector.multi_reduction <add>, %25, %cst_14 [0] : vector<56x128xf32> to vector<128xf32>
    %27 = vector.shape_cast %26 : vector<128xf32> to vector<1x128xf32>
    %c0_15 = arith.constant 0 : index
    %c0_16 = arith.constant 0 : index
    %28 = vector.load %arg7[%c0_15, %c0_16] : memref<1x1xf32, #tpu.memory_space<vmem>>, vector<1x1xf32>
    %29 = vector.broadcast %28 : vector<1x1xf32> to vector<1x128xf32>
    %30 = arith.addf %27, %29 : vector<1x128xf32>
    %c0_17 = arith.constant 0 : index
    %c0_18 = arith.constant 0 : index
    %31 = vector.load %arg8[%c0_17, %c0_18] : memref<1x128xf32, #tpu.memory_space<vmem>>, vector<1x128xf32>
    tpu.vector_store %arg8[%c0_17, %c0_18], %30 {strides = array<i32>} : memref<1x128xf32, #tpu.memory_space<vmem>>, vector<1x128xf32>,
    return
  }
  func.func @transform_0(%arg0: i32) -> (i32, i32) {
    %c0_i32 = arith.constant 0 : i32
    %c0_i32_0 = arith.constant 0 : i32
    return %c0_i32, %arg0 : i32, i32
  }
  func.func @transform_1(%arg0: i32) -> (i32, i32) {
    %c0_i32 = arith.constant 0 : i32
    %c0_i32_0 = arith.constant 0 : i32
    %c0_i32_1 = arith.constant 0 : i32
    return %c0_i32, %c0_i32_0 : i32, i32
  }
  func.func @transform_2(%arg0: i32) -> (i32, i32) {
    %c0_i32 = arith.constant 0 : i32
    %c0_i32_0 = arith.constant 0 : i32
    %c0_i32_1 = arith.constant 0 : i32
    return %c0_i32, %c0_i32_0 : i32, i32
  }
  func.func @transform_3(%arg0: i32) -> (i32, i32) {
    %c0_i32 = arith.constant 0 : i32
    %c0_i32_0 = arith.constant 0 : i32
    %c0_i32_1 = arith.constant 0 : i32
    return %c0_i32, %c0_i32_0 : i32, i32
  }
  func.func @transform_4(%arg0: i32) -> (i32, i32) {
    %c0_i32 = arith.constant 0 : i32
    %c0_i32_0 = arith.constant 0 : i32
    %c0_i32_1 = arith.constant 0 : i32
    return %c0_i32, %c0_i32_0 : i32, i32
  }
  func.func @transform_5(%arg0: i32) -> (i32, i32) {
    %c0_i32 = arith.constant 0 : i32
    %c0_i32_0 = arith.constant 0 : i32
    %c0_i32_1 = arith.constant 0 : i32
    return %c0_i32, %c0_i32_0 : i32, i32
  }
  func.func @transform_6(%arg0: i32) -> (i32, i32) {
    %c0_i32 = arith.constant 0 : i32
    %c0_i32_0 = arith.constant 0 : i32
    %c0_i32_1 = arith.constant 0 : i32
    return %c0_i32, %c0_i32_0 : i32, i32
  }
  func.func @transform_7(%arg0: i32) -> (i32, i32) {
    %c0_i32 = arith.constant 0 : i32
    %c0_i32_0 = arith.constant 0 : i32
    return %c0_i32, %arg0 : i32, i32
  }
}

</mosaic_0001>

<llo_original>
// kernel: ode_func.1
$region0: #{ode_func.1}
  #allocation0 [shape = 'u32[]', space=smem, size = 0x4, offset = 0x4, fixed_abs, tag = 'smem constant byte address 0x4 - core index']
  #allocation1 [shape = 'u32[144,128]{1,0:T(1,128)}', space=vmem, size = 0x12000, scoped, tag = 'internal scratch']
  #allocation2 [shape = 'f32[1,1]{1,0:T(1,128)S(1)}', space=vmem, size = 0x200, scoped, tag = 'scoped memory for ode_func.1']
  %s0 = inlined_call_operand.vmem [shape: f32[1,128], index: 0, kind: input, shape index: {}]
  %s1 = inlined_call_operand.vmem [shape: f32[56,1], index: 1, kind: input, shape index: {}]
  %s2 = inlined_call_operand.vmem [shape: f32[56,1], index: 2, kind: input, shape index: {}]
  %s3 = inlined_call_operand.vmem [shape: bf16[56,56], index: 3, kind: input, shape index: {}]
  %s4 = inlined_call_operand.vmem [shape: f32[56,1], index: 4, kind: input, shape index: {}]
  %s5 = inlined_call_operand.vmem [shape: f32[56,1], index: 5, kind: input, shape index: {}]
  %s6 = inlined_call_operand.<no memory space> [shape: f32[1,1], index: 6, kind: input, shape index: {}]
  %s7 = inlined_call_operand.vmem [shape: f32[1,128], index: 7, kind: output, shape index: {}]
  %s8 = sld [smem:[#allocation0]]
  $region38: #{ode_func.1} parent=0
    _
  %s10 = ssub.s32 1, %s8
  %s11 = scalar_select 0, %s10, %s8
  %v12 = vstv %s6
  %13 = vst [vmem:[#allocation2] sm:$0x1] %v12
  // Predicated region
  $region2: #{ode_func.1} parent=0 // pred_check
    _
  $region3: #{ode_func.1} parent=0 // pred_check_branch
    %15 = sbr.rel (0) target = $region5
  $region4: #{ode_func.1} parent=0 // pred_region
    _
  $region5: #{ode_func.1} parent=0 // pred_fallthru
    _
  // Predicated region
  $region6: #{ode_func.1} parent=0 // pred_check
    _
  $region7: #{ode_func.1} parent=0 // pred_check_branch
    %17 = sbr.rel (0) target = $region9
  $region8: #{ode_func.1} parent=0 // pred_region
    _
  $region9: #{ode_func.1} parent=0 // pred_fallthru
    _
  // Predicated region
  $region10: #{ode_func.1} parent=0 // pred_check
    _
  $region11: #{ode_func.1} parent=0 // pred_check_branch
    %19 = sbr.rel (0) target = $region13
  $region12: #{ode_func.1} parent=0 // pred_region
    _
  $region13: #{ode_func.1} parent=0 // pred_fallthru
    _
  // Predicated region
  $region14: #{ode_func.1} parent=0 // pred_check
    _
  $region15: #{ode_func.1} parent=0 // pred_check_branch
    %21 = sbr.rel (0) target = $region17
  $region16: #{ode_func.1} parent=0 // pred_region
    _
  $region17: #{ode_func.1} parent=0 // pred_fallthru
    _
  // Predicated region
  $region18: #{ode_func.1} parent=0 // pred_check
    _
  $region19: #{ode_func.1} parent=0 // pred_check_branch
    %23 = sbr.rel (0) target = $region21
  $region20: #{ode_func.1} parent=0 // pred_region
    _
  $region21: #{ode_func.1} parent=0 // pred_fallthru
    _
  // Predicated region
  $region22: #{ode_func.1} parent=0 // pred_check
    _
  $region23: #{ode_func.1} parent=0 // pred_check_branch
    %25 = sbr.rel (0) target = $region25
  $region24: #{ode_func.1} parent=0 // pred_region
    _
  $region25: #{ode_func.1} parent=0 // pred_fallthru
    _
  // Predicated region
  $region26: #{ode_func.1} parent=0 // pred_check
    _
  $region27: #{ode_func.1} parent=0 // pred_check_branch
    %27 = sbr.rel (0) target = $region29
  $region28: #{ode_func.1} parent=0 // pred_region
    _
  $region29: #{ode_func.1} parent=0 // pred_fallthru
    _
  %v29 = vld [vmem:[%s0] sm:$0x1]
  %v30 = vld [vmem:[%s1] sm:$0xff]
  %v31 = vld [vmem:[%s1 + $0x8] sm:$0xff]
  %v32 = vld [vmem:[%s1 + $0x10] sm:$0xff]
  %v33 = vld [vmem:[%s1 + $0x18] sm:$0xff]
  %v34 = vld [vmem:[%s1 + $0x20] sm:$0xff]
  %v35 = vld [vmem:[%s1 + $0x28] sm:$0xff]
  %v36 = vld [vmem:[%s1 + $0x30] sm:$0xff]
  %38 = vset.pattern.permute.xlu0 0
  %39 = vperm.xlu0 %38, %v30
  %v40 = vpop.permute.xlu0 %39
  %43 = vset.pattern.permute.xlu0 0
  %44 = vperm.xlu0 %43, %v31
  %v45 = vpop.permute.xlu0 %44
  %48 = vset.pattern.permute.xlu0 0
  %49 = vperm.xlu0 %48, %v32
  %v50 = vpop.permute.xlu0 %49
  %53 = vset.pattern.permute.xlu0 0
  %54 = vperm.xlu0 %53, %v33
  %v55 = vpop.permute.xlu0 %54
  %58 = vset.pattern.permute.xlu0 0
  %59 = vperm.xlu0 %58, %v34
  %v60 = vpop.permute.xlu0 %59
  %63 = vset.pattern.permute.xlu0 0
  %64 = vperm.xlu0 %63, %v35
  %v65 = vpop.permute.xlu0 %64
  %68 = vset.pattern.permute.xlu0 0
  %69 = vperm.xlu0 %68, %v36
  %v70 = vpop.permute.xlu0 %69
  %v73 = vlaneseq
  %v74 = vshrl.u32 %v73, 7
  %v75 = vsub.s32 0, %v74
  %v76 = vrot.slane %v29, %v75
  %v78 = vmul.f32 %v40, %v76
  %v79 = vmul.f32 %v45, %v76
  %v80 = vmul.f32 %v50, %v76
  %v81 = vmul.f32 %v55, %v76
  %v82 = vmul.f32 %v60, %v76
  %v83 = vmul.f32 %v65, %v76
  %v84 = vmul.f32 %v70, %v76
  %v85 = vld [vmem:[%s2] sm:$0xff]
  %v86 = vld [vmem:[%s2 + $0x8] sm:$0xff]
  %v87 = vld [vmem:[%s2 + $0x10] sm:$0xff]
  %v88 = vld [vmem:[%s2 + $0x18] sm:$0xff]
  %v89 = vld [vmem:[%s2 + $0x20] sm:$0xff]
  %v90 = vld [vmem:[%s2 + $0x28] sm:$0xff]
  %v91 = vld [vmem:[%s2 + $0x30] sm:$0xff]
  %93 = vset.pattern.permute.xlu0 0
  %94 = vperm.xlu0 %93, %v85
  %v95 = vpop.permute.xlu0 %94
  %98 = vset.pattern.permute.xlu0 0
  %99 = vperm.xlu0 %98, %v86
  %v100 = vpop.permute.xlu0 %99
  %103 = vset.pattern.permute.xlu0 0
  %104 = vperm.xlu0 %103, %v87
  %v105 = vpop.permute.xlu0 %104
  %108 = vset.pattern.permute.xlu0 0
  %109 = vperm.xlu0 %108, %v88
  %v110 = vpop.permute.xlu0 %109
  %113 = vset.pattern.permute.xlu0 0
  %114 = vperm.xlu0 %113, %v89
  %v115 = vpop.permute.xlu0 %114
  %118 = vset.pattern.permute.xlu0 0
  %119 = vperm.xlu0 %118, %v90
  %v120 = vpop.permute.xlu0 %119
  %123 = vset.pattern.permute.xlu0 0
  %124 = vperm.xlu0 %123, %v91
  %v125 = vpop.permute.xlu0 %124
  %v127 = vadd.f32 %v78, %v95
  %v128 = vadd.f32 %v79, %v100
  %v129 = vadd.f32 %v80, %v105
  %v130 = vadd.f32 %v81, %v110
  %v131 = vadd.f32 %v82, %v115
  %v132 = vadd.f32 %v83, %v120
  %v133 = vadd.f32 %v84, %v125
  %v134 = vtanh.pop %v127
  %v135 = vtanh.pop %v128
  %v136 = vtanh.pop %v129
  %v137 = vtanh.pop %v130
  %v138 = vtanh.pop %v131
  %v139 = vtanh.pop %v132
  %v140 = vtanh.pop %v133
  %v141 = vpack.c.bf16 %v135, %v134
  %v142 = vpack.c.bf16 %v137, %v136
  %v143 = vpack.c.bf16 %v139, %v138
  %v144 = vpack.c.bf16 %v140, %v140
  %v145 = vld [vmem:[%s3] sm:$0xf]
  %v146 = vld [vmem:[%s3 + $0x4] sm:$0xf]
  %v147 = vld [vmem:[%s3 + $0x8] sm:$0xf]
  %v148 = vld [vmem:[%s3 + $0xc] sm:$0xf]
  %v149 = vld [vmem:[%s3 + $0x10] sm:$0xf]
  %v150 = vld [vmem:[%s3 + $0x14] sm:$0xf]
  %v151 = vld [vmem:[%s3 + $0x18] sm:$0xf]
  %v152 = vld [vmem:[%s4] sm:$0xff]
  %v153 = vld [vmem:[%s4 + $0x8] sm:$0xff]
  %v154 = vld [vmem:[%s4 + $0x10] sm:$0xff]
  %v155 = vld [vmem:[%s4 + $0x18] sm:$0xff]
  %v156 = vld [vmem:[%s4 + $0x20] sm:$0xff]
  %v157 = vld [vmem:[%s4 + $0x28] sm:$0xff]
  %v158 = vld [vmem:[%s4 + $0x30] sm:$0xff]
  %160 = vset.pattern.permute.xlu0 0
  %161 = vperm.xlu0 %160, %v152
  %v162 = vpop.permute.xlu0 %161
  %165 = vset.pattern.permute.xlu0 0
  %166 = vperm.xlu0 %165, %v153
  %v167 = vpop.permute.xlu0 %166
  %170 = vset.pattern.permute.xlu0 0
  %171 = vperm.xlu0 %170, %v154
  %v172 = vpop.permute.xlu0 %171
  %175 = vset.pattern.permute.xlu0 0
  %176 = vperm.xlu0 %175, %v155
  %v177 = vpop.permute.xlu0 %176
  %180 = vset.pattern.permute.xlu0 0
  %181 = vperm.xlu0 %180, %v156
  %v182 = vpop.permute.xlu0 %181
  %185 = vset.pattern.permute.xlu0 0
  %186 = vperm.xlu0 %185, %v157
  %v187 = vpop.permute.xlu0 %186
  %190 = vset.pattern.permute.xlu0 0
  %191 = vperm.xlu0 %190, %v158
  %v192 = vpop.permute.xlu0 %191
  %v201 = vunpack.c.l.b16 %v145
  %v202 = vunpack.c.l.b16 %v146
  %v203 = vunpack.c.l.b16 %v147
  %v204 = vunpack.c.l.b16 %v148
  %v205 = vunpack.c.l.b16 %v149
  %v206 = vunpack.c.l.b16 %v150
  %v207 = vunpack.c.l.b16 %v151
  %v208 = vpack.c.b16 %v202, %v201
  %v209 = vpack.c.b16 %v204, %v203
  %v210 = vpack.c.b16 %v206, %v205
  %v211 = vpack.c.b16 %v207, %v207
  %vm212 = vcmask 457728
  %v214 = vsel %vm212, %v208, 0
  %v217 = vsel %vm212, %v209, 0
  %v220 = vsel %vm212, %v210, 0
  %v223 = vsel %vm212, %v211, 0
  %vm225 = vcmask 1043456
  %v227 = vsel %vm225, %v144, 0
  %229 = vmatprep.subr.bf16.mxu0 0
  %230 = vmatpush1.bf16.msra.mxu0 %v141
  %231 = vmatprep.subr.bf16.mxu0 0
  %232 = vmatpush1.bf16.msra.mxu0 %v142
  %233 = vmatprep.subr.bf16.mxu0 0
  %234 = vmatpush1.bf16.msra.mxu0 %v143
  %235 = vmatprep.subr.bf16.mxu0 0
  %236 = vmatpush1.bf16.msra.mxu0 %v227
  %237 = vmatprep.subr.bf16.mxu0 0
  %238 = vmatpush1.bf16.msra.mxu0 0
  %239 = vmatprep.subr.bf16.mxu0 0
  %240 = vmatpush1.bf16.msra.mxu0 0
  %241 = vmatprep.subr.bf16.mxu0 0
  %242 = vmatpush1.bf16.msra.mxu0 0
  %243 = vmatprep.subr.bf16.mxu0 0
  %244 = vmatpush1.bf16.msra.mxu0 0
  %245 = vmatprep.subr.bf16.mxu0 0
  %246 = vmatpush1.bf16.msra.mxu0 0
  %247 = vmatprep.subr.bf16.mxu0 0
  %248 = vmatpush1.bf16.msra.mxu0 0
  %249 = vmatprep.subr.bf16.mxu0 0
  %250 = vmatpush1.bf16.msra.mxu0 0
  %251 = vmatprep.subr.bf16.mxu0 0
  %252 = vmatpush1.bf16.msra.mxu0 0
  %253 = vmatprep.subr.bf16.mxu0 0
  %254 = vmatpush1.bf16.msra.mxu0 0
  %255 = vmatprep.subr.bf16.mxu0 0
  %256 = vmatpush1.bf16.msra.mxu0 0
  %257 = vmatprep.subr.bf16.mxu0 0
  %258 = vmatpush1.bf16.msra.mxu0 0
  %259 = vmatprep.subr.bf16.mxu0 0
  %260 = vmatpush1.bf16.msra.mxu0 0
  %261 = vmatprep.mubr.bf16.mxu0 0
  %262 = vmatmul.mubr.bf16.gmra.mrb[0].mxu0 %v214
  %v263 = vpop.f32.mrb[0].mxu0
  %v264 = vadd.f32 %v162, %v263
  %v265 = vpop.f32.mrb[0].mxu0
  %v266 = vpop.f32.mrb[0].mxu0
  %v267 = vadd.f32 %v167, %v266
  %v268 = vpop.f32.mrb[0].mxu0
  %269 = vmatprep.mubr.bf16.mxu0 0
  %270 = vmatmul.mubr.bf16.gmra.mrb[0].mxu0 %v217
  %v271 = vpop.f32.mrb[0].mxu0
  %v272 = vadd.f32 %v172, %v271
  %v273 = vpop.f32.mrb[0].mxu0
  %v274 = vpop.f32.mrb[0].mxu0
  %v275 = vadd.f32 %v177, %v274
  %v276 = vpop.f32.mrb[0].mxu0
  %277 = vmatprep.mubr.bf16.mxu0 0
  %278 = vmatmul.mubr.bf16.gmra.mrb[0].mxu0 %v220
  %v279 = vpop.f32.mrb[0].mxu0
  %v280 = vadd.f32 %v182, %v279
  %v281 = vpop.f32.mrb[0].mxu0
  %v282 = vpop.f32.mrb[0].mxu0
  %v283 = vadd.f32 %v187, %v282
  %v284 = vpop.f32.mrb[0].mxu0
  %285 = vmatprep.mubr.bf16.mxu0 0
  %286 = vmatmul.mubr.bf16.gmra.mrb[0].mxu0 %v223
  %v287 = vpop.f32.mrb[0].mxu0
  %v288 = vadd.f32 %v192, %v287
  %v289 = vpop.f32.mrb[0].mxu0
  %v290 = vpop.f32.mrb[0].mxu0
  %v291 = vpop.f32.mrb[0].mxu0
  %292 = vdwg.mxu0
  %v293 = vmin.f32 %v264, 0.0
  %v294 = vmin.f32 %v267, 0.0
  %v295 = vmin.f32 %v272, 0.0
  %v296 = vmin.f32 %v275, 0.0
  %v297 = vmin.f32 %v280, 0.0
  %v298 = vmin.f32 %v283, 0.0
  %v299 = vmin.f32 %v288, 0.0
  %v300 = vmul.f32 %v293, 1.442695
  %v301 = vpow.pop %v300
  %v302 = vmul.f32 %v294, 1.442695
  %v303 = vpow.pop %v302
  %v304 = vmul.f32 %v295, 1.442695
  %v305 = vpow.pop %v304
  %v306 = vmul.f32 %v296, 1.442695
  %v307 = vpow.pop %v306
  %v308 = vmul.f32 %v297, 1.442695
  %v309 = vpow.pop %v308
  %v310 = vmul.f32 %v298, 1.442695
  %v311 = vpow.pop %v310
  %v312 = vmul.f32 %v299, 1.442695
  %v313 = vpow.pop %v312
  %vm314 = vcmp.gt.f32.partialorder %v264, 0.0
  %vm315 = vcmp.gt.f32.partialorder %v267, 0.0
  %vm316 = vcmp.gt.f32.partialorder %v272, 0.0
  %vm317 = vcmp.gt.f32.partialorder %v275, 0.0
  %vm318 = vcmp.gt.f32.partialorder %v280, 0.0
  %vm319 = vcmp.gt.f32.partialorder %v283, 0.0
  %vm320 = vcmp.gt.f32.partialorder %v288, 0.0
  %v321 = vsub.f32 %v301, 1.0
  %v322 = vsub.f32 %v303, 1.0
  %v323 = vsub.f32 %v305, 1.0
  %v324 = vsub.f32 %v307, 1.0
  %v325 = vsub.f32 %v309, 1.0
  %v326 = vsub.f32 %v311, 1.0
  %v327 = vsub.f32 %v313, 1.0
  %v328 = vsel %vm314, %v264, %v321
  %v329 = vsel %vm315, %v267, %v322
  %v330 = vsel %vm316, %v272, %v323
  %v331 = vsel %vm317, %v275, %v324
  %v332 = vsel %vm318, %v280, %v325
  %v333 = vsel %vm319, %v283, %v326
  %v334 = vsel %vm320, %v288, %v327
  %v335 = vld [vmem:[%s5] sm:$0xff]
  %v336 = vld [vmem:[%s5 + $0x8] sm:$0xff]
  %v337 = vld [vmem:[%s5 + $0x10] sm:$0xff]
  %v338 = vld [vmem:[%s5 + $0x18] sm:$0xff]
  %v339 = vld [vmem:[%s5 + $0x20] sm:$0xff]
  %v340 = vld [vmem:[%s5 + $0x28] sm:$0xff]
  %v341 = vld [vmem:[%s5 + $0x30] sm:$0xff]
  %343 = vset.pattern.permute.xlu0 0
  %344 = vperm.xlu0 %343, %v335
  %v345 = vpop.permute.xlu0 %344
  %348 = vset.pattern.permute.xlu0 0
  %349 = vperm.xlu0 %348, %v336
  %v350 = vpop.permute.xlu0 %349
  %353 = vset.pattern.permute.xlu0 0
  %354 = vperm.xlu0 %353, %v337
  %v355 = vpop.permute.xlu0 %354
  %358 = vset.pattern.permute.xlu0 0
  %359 = vperm.xlu0 %358, %v338
  %v360 = vpop.permute.xlu0 %359
  %363 = vset.pattern.permute.xlu0 0
  %364 = vperm.xlu0 %363, %v339
  %v365 = vpop.permute.xlu0 %364
  %368 = vset.pattern.permute.xlu0 0
  %369 = vperm.xlu0 %368, %v340
  %v370 = vpop.permute.xlu0 %369
  %373 = vset.pattern.permute.xlu0 0
  %374 = vperm.xlu0 %373, %v341
  %v375 = vpop.permute.xlu0 %374
  %v377 = vmul.f32 %v345, %v328
  %v378 = vmul.f32 %v350, %v329
  %v379 = vmul.f32 %v355, %v330
  %v380 = vmul.f32 %v360, %v331
  %v381 = vmul.f32 %v365, %v332
  %v382 = vmul.f32 %v370, %v333
  %v383 = vmul.f32 %v375, %v334
  %v384 = vadd.f32 %v377, %v378
  %v385 = vadd.f32 %v384, %v379
  %v386 = vadd.f32 %v385, %v380
  %v387 = vadd.f32 %v386, %v381
  %v388 = vadd.f32 %v387, %v382
  %v389 = vadd.f32 %v388, %v383
  %v390 = vrot.slane %v389, 4
  %v391 = vadd.f32 %v389, %v390
  %v392 = vrot.slane %v391, 2
  %v393 = vadd.f32 %v391, %v392
  %v394 = vrot.slane %v393, 1
  %v395 = vadd.f32 %v393, %v394
  %v396 = vld [vmem:[#allocation2] sm:$0x1]
  %398 = vset.pattern.permute.xlu0 0
  %399 = vperm.xlu0 %398, %v396
  %v400 = vpop.permute.xlu0 %399
  %v402 = vlaneseq
  %v403 = vshrl.u32 %v402, 7
  %v404 = vsub.s32 0, %v403
  %v405 = vrot.slane %v400, %v404
  %v406 = vadd.f32 %v395, %v405
  %407 = vst [vmem:[%s7] sm:$0x1] %v406
  // Predicated region
  $region30: #{ode_func.1} parent=0 // pred_check
    _
  $region31: #{ode_func.1} parent=0 // pred_check_branch
    %409 = sbr.rel (0) target = $region33
  $region32: #{ode_func.1} parent=0 // pred_region
    _
  $region33: #{ode_func.1} parent=0 // pred_fallthru
    _
  // Predicated region
  $region34: #{ode_func.1} parent=0 // pred_check
    _
  $region35: #{ode_func.1} parent=0 // pred_check_branch
    %411 = sbr.rel (0) target = $region37
  $region36: #{ode_func.1} parent=0 // pred_region
    _
  $region37: #{ode_func.1} parent=0 // pred_fallthru
    _

</llo_original>
